<compile_context>
chip_gen: v6e
topology: v6e:2x2x1
jax: 0.10.0
libtpu: 0.0.40
codegen_flags: <defaults>
</compile_context>

<pallas_src>
import math
import functools

import numpy as np
import jax
import jax.numpy as jnp
from jax import lax
from jax.experimental import pallas as pl
from jax.experimental.pallas import tpu as pltpu

# ----------------------------- config ---------------------------------------
CFG = dict(
    min_level=3,
    max_level=4,
    num_scales=1,
    aspect_ratios=(1.0, 2.0),
    anchor_scale=2.0,
    image_size=32,
    num_classes=4,
    alpha=0.25,
    gamma=2.0,
    delta=0.1,
    box_loss_weight=50.0,
)
NUM_LEVELS = CFG["max_level"] - CFG["min_level"] + 1
A = CFG["num_scales"] * len(CFG["aspect_ratios"])      # anchors per location
K = CFG["num_classes"]
ALPHA, GAMMA, DELTA = CFG["alpha"], CFG["gamma"], CFG["delta"]
O_CLS = A * K                                          # class-head output columns
O_BOX = A * 4                                          # box-head output columns

B_IN = 2        # batch
C_IN = 8        # input channels of the synthetic backbone features
N_GT = 3        # ground-truth boxes per image

# Row-tile size: 16 at toy size (multi-step grid); 512 (v7x) / 1024 (v5e/v6e) for real sizes.
TILE_ROWS = 16


# ----------------------------- fused Pallas kernel ---------------------------
def _heads_loss_kernel(feat_ref, wc_ref, bc_ref, wb_ref, bb_ref,
                       cidx_ref, btgt_ref, part_ref):
    """Fused 1x1-conv heads + DetectionLoss partials for one row tile.

    feat:  [TR, C]      bf16 channels-last features (all levels & batch concatenated)
    wc,bc: [C, A*K], [1, A*K]   class head (bf16 weights, f32 bias)
    wb,bb: [C, A*4], [1, A*4]   box head
    cidx:  [TR, A]      int32 per-anchor class index: >=0 positive, -1 negative,
                        -2 ignored (also used for row padding)
    btgt:  [TR, A*4]    f32 encoded box targets (0 for unmatched anchors / padding)
    part:  [1, 8, 128]  per-tile partial losses: lane 0 = cls sum, lane 1 = box sum
    """
    feat = feat_ref[...]

    # 1x1-conv heads == matmuls on the MXU (bf16 in, f32 accumulate)
    cls_out = jnp.dot(feat, wc_ref[...],
                      preferred_element_type=jnp.float32) + bc_ref[...]
    box_out = jnp.dot(feat, wb_ref[...],
                      preferred_element_type=jnp.float32) + bb_ref[...]

    # ---- build one-hot class targets / ignore mask from compact class indices ----
    col = lax.broadcasted_iota(jnp.int32, cls_out.shape, 1)    # class-head column id
    t_bool = jnp.zeros(cls_out.shape, jnp.bool_)
    ignore = jnp.zeros(cls_out.shape, jnp.bool_)
    for a in range(A):                                         # A is small and static
        idx_a = cidx_ref[:, a:a + 1]                           # [TR, 1] int32
        in_a = (col >= a * K) & (col < (a + 1) * K)
        t_bool = t_bool | (in_a & ((col - a * K) == idx_a))
        ignore = ignore | (in_a & (idx_a == -2))
    t = t_bool.astype(jnp.float32)
    valid = 1.0 - ignore.astype(jnp.float32)                   # (cls_targets != -2)

    # ---- sigmoid focal loss (overflow-free; gamma == 2 specialized) ----
    x = cls_out
    e_negabs = jnp.exp(-jnp.abs(x))                            # <= 1, never overflows
    log1p_e = jnp.log1p(e_negabs)
    bce = jnp.maximum(x, 0.0) - x * t + log1p_e                # stable BCE-with-logits
    if GAMMA == 2.0:
        inv = pl.reciprocal(1.0 + e_negabs, approx=True)
        p = jnp.where(x >= 0.0, inv, 1.0 - inv)                # sigmoid(x)
        one_m_pt = jnp.where(t_bool, 1.0 - p, p)               # (1 - p_t)
        modulator = one_m_pt * one_m_pt                        # (1 - p_t)^2
    else:
        softplus_neg = log1p_e + jnp.maximum(-x, 0.0)          # softplus(-x)
        modulator = jnp.exp(GAMMA * (t * (-x) - softplus_neg))
    alpha_w = jnp.where(t_bool, ALPHA, 1.0 - ALPHA)            # boolean, no float ==
    cls_part = jnp.sum(modulator * bce * alpha_w * valid, keepdims=True)   # (1, 1)

    # ---- huber / smooth-L1 box loss ----
    btgt = btgt_ref[...]
    abs_err = jnp.abs(box_out - btgt)
    quad = jnp.minimum(abs_err, DELTA)
    lin = abs_err - quad
    hub = 0.5 * quad * quad + DELTA * lin
    # effdet convention: only nonzero target components contribute (unmatched anchors
    # and padded rows have all-zero targets -> zero contribution).
    bmask = (btgt != 0.0).astype(jnp.float32)
    box_part = jnp.sum(hub * bmask, keepdims=True)                          # (1, 1)

    # one lane-dense (1, 8, 128) partial-loss tile: lane 0 = cls, lane 1 = box
    lane = lax.broadcasted_iota(jnp.int32, part_ref.shape, 2)
    part_ref[...] = jnp.where(lane == 0, cls_part,
                              jnp.where(lane == 1, box_part, 0.0))


def _vmem_limit_bytes(tile_rows):
    """Rough VMEM budget for the chosen tile (double-buffered streams + temporaries)."""
    streamed = tile_rows * (C_IN * 2 + A * 4 + O_BOX * 4) + 8 * 128 * 4
    resident = C_IN * (O_CLS + O_BOX) * 2 + (O_CLS + O_BOX) * 4
    temps = 10 * tile_rows * max(O_CLS, O_BOX, 128) * 4        # in-kernel f32 temps
    need = 2 * (streamed + resident) + temps
    return int(min(48 * 2 ** 20, max(4 * 2 ** 20, need)))      # cap for v7x headroom


def _run_fused(feat, w_cls, b_cls, w_box, b_box, cls_idx, btgt, *, tile_rows):
    n = feat.shape[0]
    assert n % tile_rows == 0
    grid = n // tile_rows
    return pl.pallas_call(
        _heads_loss_kernel,
        out_shape=jax.ShapeDtypeStruct((grid, 8, 128), jnp.float32),
        grid_spec=pltpu.PrefetchScalarGridSpec(
            num_scalar_prefetch=0,
            grid=(grid,),
            in_specs=[
                pl.BlockSpec((tile_rows, C_IN), lambda i: (i, 0)),   # feat (bf16)
                pl.BlockSpec((C_IN, O_CLS), lambda i: (0, 0)),       # w_cls (resident)
                pl.BlockSpec((1, O_CLS), lambda i: (0, 0)),          # b_cls (resident)
                pl.BlockSpec((C_IN, O_BOX), lambda i: (0, 0)),       # w_box (resident)
                pl.BlockSpec((1, O_BOX), lambda i: (0, 0)),          # b_box (resident)
                pl.BlockSpec((tile_rows, A), lambda i: (i, 0)),      # class indices
                pl.BlockSpec((tile_rows, O_BOX), lambda i: (i, 0)),  # box targets
            ],
            out_specs=pl.BlockSpec((1, 8, 128), lambda i: (i, 0, 0)),
        ),
        compiler_params=pltpu.CompilerParams(
            dimension_semantics=("parallel",),
            vmem_limit_bytes=_vmem_limit_bytes(tile_rows)),
    )(feat, w_cls, b_cls, w_box, b_box, cls_idx, btgt)


# ----------------------------- anchors / labeling (JAX glue) ----------------
def generate_anchor_boxes(cfg):
    """effdet-style multi-level anchors in [ymin, xmin, ymax, xmax] pixel coords."""
    boxes_all, level_shapes = [], []
    for level in range(cfg["min_level"], cfg["max_level"] + 1):
        stride = 2 ** level
        h = cfg["image_size"] // stride
        level_shapes.append((h, h))
        boxes_level = []
        for scale_octave in range(cfg["num_scales"]):
            for aspect in cfg["aspect_ratios"]:
                octave_scale = scale_octave / float(cfg["num_scales"])
                base = cfg["anchor_scale"] * stride * (2.0 ** octave_scale)
                ax = math.sqrt(aspect)
                ay = 1.0 / ax
                half_x = base * ax / 2.0
                half_y = base * ay / 2.0
                xs = np.arange(stride / 2.0, cfg["image_size"], stride)
                ys = np.arange(stride / 2.0, cfg["image_size"], stride)
                xv, yv = np.meshgrid(xs, ys)
                xv, yv = xv.reshape(-1), yv.reshape(-1)
                b = np.stack([yv - half_y, xv - half_x, yv + half_y, xv + half_x], -1)
                boxes_level.append(b[:, None, :])
        boxes_level = np.concatenate(boxes_level, axis=1)       # [HW, A, 4]
        boxes_all.append(boxes_level.reshape(-1, 4))
    return np.concatenate(boxes_all, 0).astype(np.float32), level_shapes


def box_iou(anchors, gt):
    ay1, ax1, ay2, ax2 = (anchors[:, i] for i in range(4))
    gy1, gx1, gy2, gx2 = (gt[:, i] for i in range(4))
    ih = jnp.maximum(0.0, jnp.minimum(ay2[:, None], gy2[None, :])
                     - jnp.maximum(ay1[:, None], gy1[None, :]))
    iw = jnp.maximum(0.0, jnp.minimum(ax2[:, None], gx2[None, :])
                     - jnp.maximum(ax1[:, None], gx1[None, :]))
    inter = ih * iw
    area_a = (ay2 - ay1) * (ax2 - ax1)
    area_g = (gy2 - gy1) * (gx2 - gx1)
    union = area_a[:, None] + area_g[None, :] - inter
    return inter / jnp.maximum(union, 1e-8)


def encode_boxes(gt, anchors):
    """FasterRcnnBoxCoder: [ty, tx, th, tw]."""
    eps = 1e-8
    ha = anchors[:, 2] - anchors[:, 0] + eps
    wa = anchors[:, 3] - anchors[:, 1] + eps
    ya = anchors[:, 0] + ha / 2.0
    xa = anchors[:, 1] + wa / 2.0
    h = gt[:, 2] - gt[:, 0] + eps
    w = gt[:, 3] - gt[:, 1] + eps
    y = gt[:, 0] + h / 2.0
    x = gt[:, 1] + w / 2.0
    ty = (y - ya) / ha
    tx = (x - xa) / wa
    th = jnp.log(h / ha)
    tw = jnp.log(w / wa)
    return jnp.stack([ty, tx, th, tw], axis=-1)


def label_anchors(anchor_boxes, gt_boxes, gt_labels, match_threshold=0.5):
    """AnchorLabeler.label_anchors for one image (argmax matcher, force-match rows)."""
    na = anchor_boxes.shape[0]
    ng = gt_boxes.shape[0]
    sim = box_iou(anchor_boxes, gt_boxes)                 # [NA, NG]
    matched_vals = sim.max(axis=1)
    matches = sim.argmax(axis=1).astype(jnp.int32)
    is_pos = matched_vals >= match_threshold
    # force-match each gt row to its best anchor
    best_anchor = sim.argmax(axis=0)                      # [NG]
    force = jnp.zeros((na,), jnp.bool_).at[best_anchor].set(True)
    force_gt = jnp.zeros((na,), jnp.int32).at[best_anchor].set(
        jnp.arange(ng, dtype=jnp.int32))
    matches = jnp.where(force, force_gt, matches)
    is_pos = jnp.logical_or(is_pos, force)
    cls_t = jnp.where(is_pos, gt_labels[matches] - 1, -1).astype(jnp.int32)
    box_t = jnp.where(is_pos[:, None],
                      encode_boxes(gt_boxes[matches], anchor_boxes), 0.0)
    num_pos = jnp.sum(is_pos.astype(jnp.float32))
    return cls_t, box_t, num_pos


# ----------------------------- model params / target packing ----------------
def init_params(key):
    """Separate 1x1-conv class / box heads (anchor-major, class/coord-minor columns)."""
    kc, kb = jax.random.split(key)
    prior_bias = -math.log((1.0 - 0.01) / 0.01)
    w_cls = jax.random.normal(kc, (C_IN, O_CLS), jnp.float32) * 0.1
    w_box = jax.random.normal(kb, (C_IN, O_BOX), jnp.float32) * 0.1
    b_cls = jnp.full((1, O_CLS), prior_bias, jnp.float32)
    b_box = jnp.zeros((1, O_BOX), jnp.float32)
    return dict(w_cls=w_cls, b_cls=b_cls, w_box=w_box, b_box=b_box)


def build_compact_targets(cls_t_all, box_t_all, level_shapes):
    """Compact per-row targets matching the head-output row layout.

    cls_idx: [N, A]   int32 class index per anchor (>=0 pos, -1 neg, -2 ignore)
    btgt:    [N, A*4] f32 encoded box targets (anchor-major, coord-minor)
    """
    bsz = cls_t_all.shape[0]
    idx_rows, box_rows = [], []
    start = 0
    for (hl, wl) in level_shapes:
        cnt = hl * wl * A
        ct = cls_t_all[:, start:start + cnt].reshape(bsz * hl * wl, A)
        bt = box_t_all[:, start:start + cnt].reshape(bsz * hl * wl, A * 4)
        start += cnt
        idx_rows.append(ct)
        box_rows.append(bt)
    return (jnp.concatenate(idx_rows, axis=0).astype(jnp.int32),
            jnp.concatenate(box_rows, axis=0).astype(jnp.float32))


# ----------------------------- bench forward ---------------------------------
def det_bench_train_forward(params, anchor_boxes, x, gt_boxes, gt_labels, *,
                            level_shapes, tile_rows=TILE_ROWS):
    bsz, chans = x.shape[0], x.shape[1]
    # single NCHW -> NHWC layout change; everything downstream stays channels-last
    x_nhwc = jnp.transpose(x, (0, 2, 3, 1))

    # synthetic EfficientDet stand-in: average-pool to each pyramid level and flatten
    feats = []
    for (hl, wl) in level_shapes:
        sh = x.shape[2] // hl
        sw = x.shape[3] // wl
        pooled = x_nhwc.reshape(bsz, hl, sh, wl, sw, chans).mean(axis=(2, 4))
        feats.append(pooled.reshape(bsz * hl * wl, chans))
    feat_all = jnp.concatenate(feats, axis=0).astype(jnp.bfloat16)   # [N, C] bf16

    # anchor labeling (argmax IoU matcher) — gather/argmax glue in plain JAX
    cls_t_all, box_t_all, num_pos = jax.vmap(
        lambda bxs, lbl: label_anchors(anchor_boxes, bxs, lbl))(gt_boxes, gt_labels)
    npos = jnp.sum(num_pos) + 1.0

    cls_idx, btgt = build_compact_targets(cls_t_all, box_t_all, level_shapes)

    # pad rows to a multiple of the tile size; padded rows contribute zero loss
    n = feat_all.shape[0]
    n_pad = ((n + tile_rows - 1) // tile_rows) * tile_rows
    pad = n_pad - n
    if pad:
        feat_all = jnp.pad(feat_all, ((0, pad), (0, 0)))
        cls_idx = jnp.pad(cls_idx, ((0, pad), (0, 0)), constant_values=-2)
        btgt = jnp.pad(btgt, ((0, pad), (0, 0)))

    partials = _run_fused(
        feat_all,
        params["w_cls"].astype(jnp.bfloat16), params["b_cls"],
        params["w_box"].astype(jnp.bfloat16), params["b_box"],
        cls_idx, btgt, tile_rows=tile_rows)                     # [G, 8, 128]

    cls_loss = jnp.sum(partials[:, 0, 0]) / npos
    box_loss = jnp.sum(partials[:, 0, 1]) / (npos * 4.0)
    total = cls_loss + CFG["box_loss_weight"] * box_loss
    return total, cls_loss, box_loss


# ----------------------------- main ------------------------------------------
if __name__ == "__main__":
    anchor_boxes_np, level_shapes = generate_anchor_boxes(CFG)
    anchor_boxes = jnp.asarray(anchor_boxes_np)

    key = jax.random.PRNGKey(0)
    k_x, k_c, k_s, k_l, k_p = jax.random.split(key, 5)

    x = jax.random.normal(k_x, (B_IN, C_IN, CFG["image_size"], CFG["image_size"]),
                          jnp.float32)
    centers = jax.random.uniform(k_c, (B_IN, N_GT, 2), minval=8.0, maxval=24.0)
    sizes = jax.random.uniform(k_s, (B_IN, N_GT, 2), minval=8.0, maxval=20.0)
    ymin = jnp.clip(centers[..., 0] - sizes[..., 0] / 2, 0.0, CFG["image_size"])
    xmin = jnp.clip(centers[..., 1] - sizes[..., 1] / 2, 0.0, CFG["image_size"])
    ymax = jnp.clip(centers[..., 0] + sizes[..., 0] / 2, 0.0, CFG["image_size"])
    xmax = jnp.clip(centers[..., 1] + sizes[..., 1] / 2, 0.0, CFG["image_size"])
    gt_boxes = jnp.stack([ymin, xmin, ymax, xmax], axis=-1)           # [B, NGT, 4]
    gt_labels = jax.random.randint(k_l, (B_IN, N_GT), 1, K + 1).astype(jnp.int32)

    params = init_params(k_p)

    forward = jax.jit(functools.partial(det_bench_train_forward,
                                        level_shapes=level_shapes))
    total, cls_loss, box_loss = forward(params, anchor_boxes, x, gt_boxes, gt_labels)
    total = jax.block_until_ready(total)
    cls_loss = jax.block_until_ready(cls_loss)
    box_loss = jax.block_until_ready(box_loss)

    print("KERNEL_OK")
</pallas_src>

<mosaic_0001>
module attributes {stable_mosaic.version = 11 : i64} {
  func.func @_heads_loss_kernel(%arg0: i32, %arg1: memref<16x8xbf16, #tpu.memory_space<vmem>>, %arg2: memref<8x8xbf16, #tpu.memory_space<vmem>>, %arg3: memref<1x8xf32, #tpu.memory_space<vmem>>, %arg4: memref<8x8xbf16, #tpu.memory_space<vmem>>, %arg5: memref<1x8xf32, #tpu.memory_space<vmem>>, %arg6: memref<16x2xi32, #tpu.memory_space<vmem>>, %arg7: memref<16x8xf32, #tpu.memory_space<vmem>>, %arg8: memref<1x8x128xf32, #tpu.memory_space<vmem>>) attributes {dimension_semantics = [#tpu.dimension_semantics<parallel>], iteration_bounds = array<i64: 3>, scalar_prefetch = 0 : i64, scratch_operands = 0 : i64, tpu.core_type = #tpu.core_type<tc>, window_params = [{transform_indices = @transform_0, window_bounds = array<i64: 16, 8>}, {pipeline_mode = #tpu.pipeline_mode<synchronous>, transform_indices = @transform_1, window_bounds = array<i64: 8, 8>}, {pipeline_mode = #tpu.pipeline_mode<synchronous>, transform_indices = @transform_2, window_bounds = array<i64: 1, 8>}, {pipeline_mode = #tpu.pipeline_mode<synchronous>, transform_indices = @transform_3, window_bounds = array<i64: 8, 8>}, {pipeline_mode = #tpu.pipeline_mode<synchronous>, transform_indices = @transform_4, window_bounds = array<i64: 1, 8>}, {transform_indices = @transform_5, window_bounds = array<i64: 16, 2>}, {transform_indices = @transform_6, window_bounds = array<i64: 16, 8>}, {transform_indices = @transform_7, window_bounds = array<i64: 1, 8, 128>}]} {
    %c0 = arith.constant 0 : index
    %c0_0 = arith.constant 0 : index
    %0 = vector.load %arg1[%c0, %c0_0] : memref<16x8xbf16, #tpu.memory_space<vmem>>, vector<16x8xbf16>
    %c0_1 = arith.constant 0 : index
    %c0_2 = arith.constant 0 : index
    %1 = vector.load %arg2[%c0_1, %c0_2] : memref<8x8xbf16, #tpu.memory_space<vmem>>, vector<8x8xbf16>
    %cst = arith.constant dense<0.000000e+00> : vector<16x8xf32>
    %2 = tpu.matmul %0, %1, %cst {dimension_numbers = #tpu.dot_dimension_numbers<[1], [0], [0], [1], [0, 0, 1, 1], [], []>} : vector<16x8xbf16>, vector<8x8xbf16>, vector<16x8xf32> -> vector<16x8xf32>
    %c0_3 = arith.constant 0 : index
    %c0_4 = arith.constant 0 : index
    %3 = vector.load %arg3[%c0_3, %c0_4] : memref<1x8xf32, #tpu.memory_space<vmem>>, vector<1x8xf32>
    %4 = vector.broadcast %3 : vector<1x8xf32> to vector<16x8xf32>
    %5 = arith.addf %2, %4 : vector<16x8xf32>
    %c0_5 = arith.constant 0 : index
    %c0_6 = arith.constant 0 : index
    %6 = vector.load %arg4[%c0_5, %c0_6] : memref<8x8xbf16, #tpu.memory_space<vmem>>, vector<8x8xbf16>
    %cst_7 = arith.constant dense<0.000000e+00> : vector<16x8xf32>
    %7 = tpu.matmul %0, %6, %cst_7 {dimension_numbers = #tpu.dot_dimension_numbers<[1], [0], [0], [1], [0, 0, 1, 1], [], []>} : vector<16x8xbf16>, vector<8x8xbf16>, vector<16x8xf32> -> vector<16x8xf32>
    %c0_8 = arith.constant 0 : index
    %c0_9 = arith.constant 0 : index
    %8 = vector.load %arg5[%c0_8, %c0_9] : memref<1x8xf32, #tpu.memory_space<vmem>>, vector<1x8xf32>
    %9 = vector.broadcast %8 : vector<1x8xf32> to vector<16x8xf32>
    %10 = arith.addf %7, %9 : vector<16x8xf32>
    %11 = tpu.iota {dimensions = array<i32: 1>} : vector<16x8xi32>
    %false = arith.constant false
    %12 = vector.broadcast %false : i1 to vector<16x8xi1>
    %false_10 = arith.constant false
    %13 = vector.broadcast %false_10 : i1 to vector<16x8xi1>
    %c0_11 = arith.constant 0 : index
    %c0_12 = arith.constant 0 : index
    %14 = vector.load %arg6[%c0_11, %c0_12] : memref<16x2xi32, #tpu.memory_space<vmem>>, vector<16x1xi32>
    %c0_i32 = arith.constant 0 : i32
    %15 = vector.broadcast %c0_i32 : i32 to vector<16x8xi32>
    %16 = arith.cmpi sge, %11, %15 : vector<16x8xi32>
    %c4_i32 = arith.constant 4 : i32
    %17 = vector.broadcast %c4_i32 : i32 to vector<16x8xi32>
    %18 = arith.cmpi slt, %11, %17 : vector<16x8xi32>
    %19 = arith.andi %16, %18 : vector<16x8xi1>
    %c0_i32_13 = arith.constant 0 : i32
    %20 = vector.broadcast %c0_i32_13 : i32 to vector<16x8xi32>
    %21 = arith.subi %11, %20 : vector<16x8xi32>
    %22 = vector.broadcast %14 : vector<16x1xi32> to vector<16x8xi32>
    %23 = arith.cmpi eq, %21, %22 : vector<16x8xi32>
    %24 = arith.andi %19, %23 : vector<16x8xi1>
    %25 = arith.ori %12, %24 : vector<16x8xi1>
    %c-2_i32 = arith.constant -2 : i32
    %26 = vector.broadcast %c-2_i32 : i32 to vector<16x1xi32>
    %27 = arith.cmpi eq, %14, %26 : vector<16x1xi32>
    %28 = vector.broadcast %27 : vector<16x1xi1> to vector<16x8xi1>
    %29 = arith.andi %19, %28 : vector<16x8xi1>
    %30 = arith.ori %13, %29 : vector<16x8xi1>
    %c0_14 = arith.constant 0 : index
    %c1 = arith.constant 1 : index
    %31 = vector.load %arg6[%c0_14, %c1] : memref<16x2xi32, #tpu.memory_space<vmem>>, vector<16x1xi32>
    %c4_i32_15 = arith.constant 4 : i32
    %32 = vector.broadcast %c4_i32_15 : i32 to vector<16x8xi32>
    %33 = arith.cmpi sge, %11, %32 : vector<16x8xi32>
    %c8_i32 = arith.constant 8 : i32
    %34 = vector.broadcast %c8_i32 : i32 to vector<16x8xi32>
    %35 = arith.cmpi slt, %11, %34 : vector<16x8xi32>
    %36 = arith.andi %33, %35 : vector<16x8xi1>
    %c4_i32_16 = arith.constant 4 : i32
    %37 = vector.broadcast %c4_i32_16 : i32 to vector<16x8xi32>
    %38 = arith.subi %11, %37 : vector<16x8xi32>
    %39 = vector.broadcast %31 : vector<16x1xi32> to vector<16x8xi32>
    %40 = arith.cmpi eq, %38, %39 : vector<16x8xi32>
    %41 = arith.andi %36, %40 : vector<16x8xi1>
    %42 = arith.ori %25, %41 : vector<16x8xi1>
    %c-2_i32_17 = arith.constant -2 : i32
    %43 = vector.broadcast %c-2_i32_17 : i32 to vector<16x1xi32>
    %44 = arith.cmpi eq, %31, %43 : vector<16x1xi32>
    %45 = vector.broadcast %44 : vector<16x1xi1> to vector<16x8xi1>
    %46 = arith.andi %36, %45 : vector<16x8xi1>
    %47 = arith.ori %30, %46 : vector<16x8xi1>
    %48 = arith.extui %42 : vector<16x8xi1> to vector<16x8xi32>
    %49 = arith.sitofp %48 : vector<16x8xi32> to vector<16x8xf32>
    %50 = arith.extui %47 : vector<16x8xi1> to vector<16x8xi32>
    %51 = arith.sitofp %50 : vector<16x8xi32> to vector<16x8xf32>
    %cst_18 = arith.constant 1.000000e+00 : f32
    %52 = vector.broadcast %cst_18 : f32 to vector<16x8xf32>
    %53 = arith.subf %52, %51 : vector<16x8xf32>
    %54 = math.absf %5 : vector<16x8xf32>
    %cst_19 = arith.constant 0.000000e+00 : f32
    %55 = vector.broadcast %cst_19 : f32 to vector<16x8xf32>
    %56 = arith.subf %55, %54 : vector<16x8xf32>
    %57 = math.exp %56 : vector<16x8xf32>
    %58 = math.log1p %57 : vector<16x8xf32>
    %cst_20 = arith.constant 0.000000e+00 : f32
    %59 = vector.broadcast %cst_20 : f32 to vector<16x8xf32>
    %60 = arith.maximumf %5, %59 : vector<16x8xf32>
    %61 = arith.mulf %5, %49 : vector<16x8xf32>
    %62 = arith.subf %60, %61 : vector<16x8xf32>
    %63 = arith.addf %62, %58 : vector<16x8xf32>
    %cst_21 = arith.constant 1.000000e+00 : f32
    %64 = vector.broadcast %cst_21 : f32 to vector<16x8xf32>
    %65 = arith.addf %64, %57 : vector<16x8xf32>
    %66 = tpu.reciprocal %65 {approx = true} : vector<16x8xf32> -> vector<16x8xf32>
    %cst_22 = arith.constant 0.000000e+00 : f32
    %67 = vector.broadcast %cst_22 : f32 to vector<16x8xf32>
    %68 = arith.cmpf oge, %5, %67 : vector<16x8xf32>
    %cst_23 = arith.constant 1.000000e+00 : f32
    %69 = vector.broadcast %cst_23 : f32 to vector<16x8xf32>
    %70 = arith.subf %69, %66 : vector<16x8xf32>
    %71 = arith.select %68, %66, %70 : vector<16x8xi1>, vector<16x8xf32>
    %cst_24 = arith.constant 1.000000e+00 : f32
    %72 = vector.broadcast %cst_24 : f32 to vector<16x8xf32>
    %73 = arith.subf %72, %71 : vector<16x8xf32>
    %74 = arith.select %42, %73, %71 : vector<16x8xi1>, vector<16x8xf32>
    %75 = arith.mulf %74, %74 : vector<16x8xf32>
    %cst_25 = arith.constant 2.500000e-01 : f32
    %cst_26 = arith.constant 7.500000e-01 : f32
    %76 = vector.broadcast %cst_25 : f32 to vector<16x8xf32>
    %77 = vector.broadcast %cst_26 : f32 to vector<16x8xf32>
    %78 = arith.select %42, %76, %77 : vector<16x8xi1>, vector<16x8xf32>
    %79 = arith.mulf %75, %63 : vector<16x8xf32>
    %80 = arith.mulf %79, %78 : vector<16x8xf32>
    %81 = arith.mulf %80, %53 : vector<16x8xf32>
    %82 = vector.shape_cast %81 : vector<16x8xf32> to vector<1x16x8xf32>
    %cst_27 = arith.constant dense<0.000000e+00> : vector<1xf32>
    %83 = vector.multi_reduction <add>, %82, %cst_27 [1, 2] : vector<1x16x8xf32> to vector<1xf32>
    %84 = vector.shape_cast %83 : vector<1xf32> to vector<1x1x1xf32>
    %85 = vector.extract %84[0, 0, 0] : f32 from vector<1x1x1xf32>
    %86 = vector.broadcast %85 : f32 to vector<1x1xf32>
    %c0_28 = arith.constant 0 : index
    %c0_29 = arith.constant 0 : index
    %87 = vector.load %arg7[%c0_28, %c0_29] : memref<16x8xf32, #tpu.memory_space<vmem>>, vector<16x8xf32>
    %88 = arith.subf %10, %87 : vector<16x8xf32>
    %89 = math.absf %88 : vector<16x8xf32>
    %cst_30 = arith.constant 1.000000e-01 : f32
    %90 = vector.broadcast %cst_30 : f32 to vector<16x8xf32>
    %91 = arith.minimumf %89, %90 : vector<16x8xf32>
    %92 = arith.subf %89, %91 : vector<16x8xf32>
    %cst_31 = arith.constant 5.000000e-01 : f32
    %93 = vector.broadcast %cst_31 : f32 to vector<16x8xf32>
    %94 = arith.mulf %93, %91 : vector<16x8xf32>
    %95 = arith.mulf %94, %91 : vector<16x8xf32>
    %cst_32 = arith.constant 1.000000e-01 : f32
    %96 = vector.broadcast %cst_32 : f32 to vector<16x8xf32>
    %97 = arith.mulf %96, %92 : vector<16x8xf32>
    %98 = arith.addf %95, %97 : vector<16x8xf32>
    %cst_33 = arith.constant 0.000000e+00 : f32
    %99 = vector.broadcast %cst_33 : f32 to vector<16x8xf32>
    %100 = arith.cmpf one, %87, %99 : vector<16x8xf32>
    %101 = arith.extui %100 : vector<16x8xi1> to vector<16x8xi32>
    %102 = arith.sitofp %101 : vector<16x8xi32> to vector<16x8xf32>
    %103 = arith.mulf %98, %102 : vector<16x8xf32>
    %104 = vector.shape_cast %103 : vector<16x8xf32> to vector<1x16x8xf32>
    %cst_34 = arith.constant dense<0.000000e+00> : vector<1xf32>
    %105 = vector.multi_reduction <add>, %104, %cst_34 [1, 2] : vector<1x16x8xf32> to vector<1xf32>
    %106 = vector.shape_cast %105 : vector<1xf32> to vector<1x1x1xf32>
    %107 = vector.extract %106[0, 0, 0] : f32 from vector<1x1x1xf32>
    %108 = vector.broadcast %107 : f32 to vector<1x1xf32>
    %109 = tpu.iota {dimensions = array<i32: 2>} : vector<1x8x128xi32>
    %c0_i32_35 = arith.constant 0 : i32
    %110 = vector.broadcast %c0_i32_35 : i32 to vector<1x8x128xi32>
    %111 = arith.cmpi eq, %109, %110 : vector<1x8x128xi32>
    %c1_i32 = arith.constant 1 : i32
    %112 = vector.broadcast %c1_i32 : i32 to vector<1x8x128xi32>
    %113 = arith.cmpi eq, %109, %112 : vector<1x8x128xi32>
    %cst_36 = arith.constant 0.000000e+00 : f32
    %114 = vector.shape_cast %108 : vector<1x1xf32> to vector<1x1x1xf32>
    %115 = vector.broadcast %114 : vector<1x1x1xf32> to vector<1x8x128xf32>
    %116 = vector.broadcast %cst_36 : f32 to vector<1x8x128xf32>
    %117 = arith.select %113, %115, %116 : vector<1x8x128xi1>, vector<1x8x128xf32>
    %118 = vector.shape_cast %86 : vector<1x1xf32> to vector<1x1x1xf32>
    %119 = vector.broadcast %118 : vector<1x1x1xf32> to vector<1x8x128xf32>
    %120 = arith.select %111, %119, %117 : vector<1x8x128xi1>, vector<1x8x128xf32>
    %c0_37 = arith.constant 0 : index
    %c0_38 = arith.constant 0 : index
    %c0_39 = arith.constant 0 : index
    %121 = vector.load %arg8[%c0_37, %c0_38, %c0_39] : memref<1x8x128xf32, #tpu.memory_space<vmem>>, vector<1x8x128xf32>
    tpu.vector_store %arg8[%c0_37, %c0_38, %c0_39], %120 {strides = array<i32>} : memref<1x8x128xf32, #tpu.memory_space<vmem>>, vector<1x8x128xf32>,
    return
  }
  func.func @transform_0(%arg0: i32) -> (i32, i32) {
    %c0_i32 = arith.constant 0 : i32
    %c0_i32_0 = arith.constant 0 : i32
    return %arg0, %c0_i32 : i32, i32
  }
  func.func @transform_1(%arg0: i32) -> (i32, i32) {
    %c0_i32 = arith.constant 0 : i32
    %c0_i32_0 = arith.constant 0 : i32
    %c0_i32_1 = arith.constant 0 : i32
    return %c0_i32, %c0_i32_0 : i32, i32
  }
  func.func @transform_2(%arg0: i32) -> (i32, i32) {
    %c0_i32 = arith.constant 0 : i32
    %c0_i32_0 = arith.constant 0 : i32
    %c0_i32_1 = arith.constant 0 : i32
    return %c0_i32, %c0_i32_0 : i32, i32
  }
  func.func @transform_3(%arg0: i32) -> (i32, i32) {
    %c0_i32 = arith.constant 0 : i32
    %c0_i32_0 = arith.constant 0 : i32
    %c0_i32_1 = arith.constant 0 : i32
    return %c0_i32, %c0_i32_0 : i32, i32
  }
  func.func @transform_4(%arg0: i32) -> (i32, i32) {
    %c0_i32 = arith.constant 0 : i32
    %c0_i32_0 = arith.constant 0 : i32
    %c0_i32_1 = arith.constant 0 : i32
    return %c0_i32, %c0_i32_0 : i32, i32
  }
  func.func @transform_5(%arg0: i32) -> (i32, i32) {
    %c0_i32 = arith.constant 0 : i32
    %c0_i32_0 = arith.constant 0 : i32
    return %arg0, %c0_i32 : i32, i32
  }
  func.func @transform_6(%arg0: i32) -> (i32, i32) {
    %c0_i32 = arith.constant 0 : i32
    %c0_i32_0 = arith.constant 0 : i32
    return %arg0, %c0_i32 : i32, i32
  }
  func.func @transform_7(%arg0: i32) -> (i32, i32, i32) {
    %c0_i32 = arith.constant 0 : i32
    %c0_i32_0 = arith.constant 0 : i32
    %c0_i32_1 = arith.constant 0 : i32
    return %arg0, %c0_i32, %c0_i32_0 : i32, i32, i32
  }
}

</mosaic_0001>

<llo_original>
// kernel: det_bench_train_forward.1
$region0: #{det_bench_train_forward.1}
  #allocation0 [shape = 'u32[]', space=smem, size = 0x4, offset = 0x4, fixed_abs, tag = 'smem constant byte address 0x4 - core index']
  #allocation1 [shape = 'u32[144,128]{1,0:T(1,128)}', space=vmem, size = 0x12000, scoped, tag = 'internal scratch']
  %s0 = inlined_call_operand.vmem [shape: bf16[48,8], index: 0, kind: input, shape index: {}]
  %s1 = inlined_call_operand.vmem [shape: bf16[8,8], index: 1, kind: input, shape index: {}]
  %s2 = inlined_call_operand.vmem [shape: f32[1,8], index: 2, kind: input, shape index: {}]
  %s3 = inlined_call_operand.vmem [shape: bf16[8,8], index: 3, kind: input, shape index: {}]
  %s4 = inlined_call_operand.vmem [shape: f32[1,8], index: 4, kind: input, shape index: {}]
  %s5 = inlined_call_operand.vmem [shape: s32[48,2], index: 5, kind: input, shape index: {}]
  %s6 = inlined_call_operand.vmem [shape: f32[48,8], index: 6, kind: input, shape index: {}]
  %s7 = inlined_call_operand.vmem [shape: f32[3,8,128], index: 7, kind: output, shape index: {}]
  %s8 = sld [smem:[#allocation0]]
  $region61: #{det_bench_train_forward.1} parent=0
    _
  %s10 = ssub.s32 1, %s8
  %s11 = scalar_select 0, %s10, %s8
  loop: start=0, step=1, limit=5
  $region2: #{det_bench_train_forward.1} parent=0 // loop_pre_header
    _
  $region3: #{det_bench_train_forward.1} parent=0 // loop_header
    %s13 = sphi 0, %s17
    %p14 = scmp.ge.s32.totalorder %s13, 5
    %s23 = sphi 0, %s25
    %s26 = sphi 0, %s23
    %s27 = sphi 0, %s26
    %s43 = sphi 0, %s27
    %s47 = sphi 0, %s47
    %s49 = sphi 0, %s47
    %s50 = sphi 0, %s49
    %s64 = sphi 0, %s50
    %s68 = sphi 0, %s68
    %s70 = sphi 0, %s68
    %s71 = sphi 0, %s70
    %s85 = sphi 0, %s71
    %s89 = sphi 0, %s89
    %s91 = sphi 0, %s89
    %s92 = sphi 0, %s91
    %s106 = sphi 0, %s92
    %s110 = sphi 0, %s110
    %s112 = sphi 0, %s110
    %s113 = sphi 0, %s112
    %s127 = sphi 0, %s113
    %s133 = sphi 0, %s135
    %s136 = sphi 0, %s133
    %s137 = sphi 0, %s136
    %s153 = sphi 0, %s137
    %s159 = sphi 0, %s161
    %s162 = sphi 0, %s159
    %s163 = sphi 0, %s162
    %s179 = sphi 0, %s163
    %s185 = sphi 0, %s187
    %s188 = sphi 0, %s185
    %s189 = sphi 0, %s188
    %s205 = sphi 0, %s189
  $region4: #{det_bench_train_forward.1} parent=0 // loop_header_branch
    %16 = sbr.rel (%p14) target = $region8
  $region5: #{det_bench_train_forward.1} parent=0 // loop_body
    %s18 = ssub.s32 %s13, 1
    %s19 = ssub.s32 %s13, 2
    %s20 = sadd.s32 %s13, 1
    %s21 = ssub.s32 %s13, %s20
    %p22 = scmp.eq.s32.totalorder %s21, 0
    %s24 = sadd.s32 %s23, 1
    %s25 = scalar_select %p22, %s23, %s24
    %p28 = pneg %p22
    %p29 = scmp.eq.s32.totalorder %s13, 2
    %p30 = por %p28, %p29
    %p31 = scmp.ne.s32.totalorder %s23, %s26
    %p32 = scmp.eq.s32.totalorder %s13, 0
    %p33 = por %p31, %p32
    %p34 = scmp.ne.s32.totalorder %s23, %s26
    %p35 = scmp.eq.s32.totalorder %s18, 2
    %p36 = por %p34, %p35
    %p37 = scmp.ne.s32.totalorder %s26, %s27
    %p38 = scmp.eq.s32.totalorder %s18, 0
    %p39 = por %p37, %p38
    %p40 = scmp.ne.s32.totalorder %s26, %s27
    %p41 = scmp.eq.s32.totalorder %s19, 2
    %p42 = por %p40, %p41
    %p44 = scmp.ne.s32.totalorder %s27, %s43
    %p45 = scmp.eq.s32.totalorder %s19, 0
    %p46 = por %p44, %p45
    %s48 = sadd.s32 %s47, 1
    %p51 = scmp.eq.s32.totalorder %s13, 2
    %p52 = scmp.ne.s32.totalorder %s47, %s49
    %p53 = scmp.eq.s32.totalorder %s13, 0
    %p54 = por %p52, %p53
    %p55 = scmp.ne.s32.totalorder %s47, %s49
    %p56 = scmp.eq.s32.totalorder %s18, 2
    %p57 = por %p55, %p56
    %p58 = scmp.ne.s32.totalorder %s49, %s50
    %p59 = scmp.eq.s32.totalorder %s18, 0
    %p60 = por %p58, %p59
    %p61 = scmp.ne.s32.totalorder %s49, %s50
    %p62 = scmp.eq.s32.totalorder %s19, 2
    %p63 = por %p61, %p62
    %p65 = scmp.ne.s32.totalorder %s50, %s64
    %p66 = scmp.eq.s32.totalorder %s19, 0
    %p67 = por %p65, %p66
    %s69 = sadd.s32 %s68, 1
    %p72 = scmp.eq.s32.totalorder %s13, 2
    %p73 = scmp.ne.s32.totalorder %s68, %s70
    %p74 = scmp.eq.s32.totalorder %s13, 0
    %p75 = por %p73, %p74
    %p76 = scmp.ne.s32.totalorder %s68, %s70
    %p77 = scmp.eq.s32.totalorder %s18, 2
    %p78 = por %p76, %p77
    %p79 = scmp.ne.s32.totalorder %s70, %s71
    %p80 = scmp.eq.s32.totalorder %s18, 0
    %p81 = por %p79, %p80
    %p82 = scmp.ne.s32.totalorder %s70, %s71
    %p83 = scmp.eq.s32.totalorder %s19, 2
    %p84 = por %p82, %p83
    %p86 = scmp.ne.s32.totalorder %s71, %s85
    %p87 = scmp.eq.s32.totalorder %s19, 0
    %p88 = por %p86, %p87
    %s90 = sadd.s32 %s89, 1
    %p93 = scmp.eq.s32.totalorder %s13, 2
    %p94 = scmp.ne.s32.totalorder %s89, %s91
    %p95 = scmp.eq.s32.totalorder %s13, 0
    %p96 = por %p94, %p95
    %p97 = scmp.ne.s32.totalorder %s89, %s91
    %p98 = scmp.eq.s32.totalorder %s18, 2
    %p99 = por %p97, %p98
    %p100 = scmp.ne.s32.totalorder %s91, %s92
    %p101 = scmp.eq.s32.totalorder %s18, 0
    %p102 = por %p100, %p101
    %p103 = scmp.ne.s32.totalorder %s91, %s92
    %p104 = scmp.eq.s32.totalorder %s19, 2
    %p105 = por %p103, %p104
    %p107 = scmp.ne.s32.totalorder %s92, %s106
    %p108 = scmp.eq.s32.totalorder %s19, 0
    %p109 = por %p107, %p108
    %s111 = sadd.s32 %s110, 1
    %p114 = scmp.eq.s32.totalorder %s13, 2
    %p115 = scmp.ne.s32.totalorder %s110, %s112
    %p116 = scmp.eq.s32.totalorder %s13, 0
    %p117 = por %p115, %p116
    %p118 = scmp.ne.s32.totalorder %s110, %s112
    %p119 = scmp.eq.s32.totalorder %s18, 2
    %p120 = por %p118, %p119
    %p121 = scmp.ne.s32.totalorder %s112, %s113
    %p122 = scmp.eq.s32.totalorder %s18, 0
    %p123 = por %p121, %p122
    %p124 = scmp.ne.s32.totalorder %s112, %s113
    %p125 = scmp.eq.s32.totalorder %s19, 2
    %p126 = por %p124, %p125
    %p128 = scmp.ne.s32.totalorder %s113, %s127
    %p129 = scmp.eq.s32.totalorder %s19, 0
    %p130 = por %p128, %p129
    %s131 = ssub.s32 %s13, %s20
    %p132 = scmp.eq.s32.totalorder %s131, 0
    %s134 = sadd.s32 %s133, 1
    %s135 = scalar_select %p132, %s133, %s134
    %p138 = pneg %p132
    %p139 = scmp.eq.s32.totalorder %s13, 2
    %p140 = por %p138, %p139
    %p141 = scmp.ne.s32.totalorder %s133, %s136
    %p142 = scmp.eq.s32.totalorder %s13, 0
    %p143 = por %p141, %p142
    %p144 = scmp.ne.s32.totalorder %s133, %s136
    %p145 = scmp.eq.s32.totalorder %s18, 2
    %p146 = por %p144, %p145
    %p147 = scmp.ne.s32.totalorder %s136, %s137
    %p148 = scmp.eq.s32.totalorder %s18, 0
    %p149 = por %p147, %p148
    %p150 = scmp.ne.s32.totalorder %s136, %s137
    %p151 = scmp.eq.s32.totalorder %s19, 2
    %p152 = por %p150, %p151
    %p154 = scmp.ne.s32.totalorder %s137, %s153
    %p155 = scmp.eq.s32.totalorder %s19, 0
    %p156 = por %p154, %p155
    %s157 = ssub.s32 %s13, %s20
    %p158 = scmp.eq.s32.totalorder %s157, 0
    %s160 = sadd.s32 %s159, 1
    %s161 = scalar_select %p158, %s159, %s160
    %p164 = pneg %p158
    %p165 = scmp.eq.s32.totalorder %s13, 2
    %p166 = por %p164, %p165
    %p167 = scmp.ne.s32.totalorder %s159, %s162
    %p168 = scmp.eq.s32.totalorder %s13, 0
    %p169 = por %p167, %p168
    %p170 = scmp.ne.s32.totalorder %s159, %s162
    %p171 = scmp.eq.s32.totalorder %s18, 2
    %p172 = por %p170, %p171
    %p173 = scmp.ne.s32.totalorder %s162, %s163
    %p174 = scmp.eq.s32.totalorder %s18, 0
    %p175 = por %p173, %p174
    %p176 = scmp.ne.s32.totalorder %s162, %s163
    %p177 = scmp.eq.s32.totalorder %s19, 2
    %p178 = por %p176, %p177
    %p180 = scmp.ne.s32.totalorder %s163, %s179
    %p181 = scmp.eq.s32.totalorder %s19, 0
    %p182 = por %p180, %p181
    %s183 = ssub.s32 %s13, %s20
    %p184 = scmp.eq.s32.totalorder %s183, 0
    %s186 = sadd.s32 %s185, 1
    %s187 = scalar_select %p184, %s185, %s186
    %p190 = pneg %p184
    %p191 = scmp.eq.s32.totalorder %s13, 2
    %p192 = por %p190, %p191
    %p193 = scmp.ne.s32.totalorder %s185, %s188
    %p194 = scmp.eq.s32.totalorder %s13, 0
    %p195 = por %p193, %p194
    %p196 = scmp.ne.s32.totalorder %s185, %s188
    %p197 = scmp.eq.s32.totalorder %s18, 2
    %p198 = por %p196, %p197
    %p199 = scmp.ne.s32.totalorder %s188, %s189
    %p200 = scmp.eq.s32.totalorder %s18, 0
    %p201 = por %p199, %p200
    %p202 = scmp.ne.s32.totalorder %s188, %s189
    %p203 = scmp.eq.s32.totalorder %s19, 2
    %p204 = por %p202, %p203
    %p206 = scmp.ne.s32.totalorder %s189, %s205
    %p207 = scmp.eq.s32.totalorder %s19, 0
    %p208 = por %p206, %p207
    %p209 = scmp.le.s32.totalorder 1, %s13
    %p210 = scmp.lt.s32.totalorder %s13, 4
    %p211 = pnand %p209, %p210
    %p212 = pneg %p211
    // Predicated region
    $region9: #{det_bench_train_forward.1} parent=5 // pred_check
      _
    $region10: #{det_bench_train_forward.1} parent=5 // pred_check_branch
      %214 = sbr.rel (%p211) target = $region12
    $region11: #{det_bench_train_forward.1} parent=5 // pred_region
      %s215 = ssub.s32 %s13, 1
      // Predicated region
      $region13: #{det_bench_train_forward.1} parent=11 // pred_check
        %p216 = pneg %p60
      $region14: #{det_bench_train_forward.1} parent=11 // pred_check_branch
        %218 = sbr.rel (%p216) target = $region16
      $region15: #{det_bench_train_forward.1} parent=11 // pred_region
        _
      $region16: #{det_bench_train_forward.1} parent=11 // pred_fallthru
        _
      // Predicated region
      $region17: #{det_bench_train_forward.1} parent=11 // pred_check
        %p219 = pneg %p81
      $region18: #{det_bench_train_forward.1} parent=11 // pred_check_branch
        %221 = sbr.rel (%p219) target = $region20
      $region19: #{det_bench_train_forward.1} parent=11 // pred_region
        _
      $region20: #{det_bench_train_forward.1} parent=11 // pred_fallthru
        _
      // Predicated region
      $region21: #{det_bench_train_forward.1} parent=11 // pred_check
        %p222 = pneg %p102
      $region22: #{det_bench_train_forward.1} parent=11 // pred_check_branch
        %224 = sbr.rel (%p222) target = $region24
      $region23: #{det_bench_train_forward.1} parent=11 // pred_region
        _
      $region24: #{det_bench_train_forward.1} parent=11 // pred_fallthru
        _
      // Predicated region
      $region25: #{det_bench_train_forward.1} parent=11 // pred_check
        %p225 = pneg %p123
      $region26: #{det_bench_train_forward.1} parent=11 // pred_check_branch
        %227 = sbr.rel (%p225) target = $region28
      $region27: #{det_bench_train_forward.1} parent=11 // pred_region
        _
      $region28: #{det_bench_train_forward.1} parent=11 // pred_fallthru
        _
    $region12: #{det_bench_train_forward.1} parent=5 // pred_fallthru
      _
    %p228 = scmp.lt.s32.totalorder %s13, 3
    // Predicated region
    $region29: #{det_bench_train_forward.1} parent=5 // pred_check
      %p229 = pneg %p228
    $region30: #{det_bench_train_forward.1} parent=5 // pred_check_branch
      %231 = sbr.rel (%p229) target = $region32
    $region31: #{det_bench_train_forward.1} parent=5 // pred_region
      // Predicated region
      $region33: #{det_bench_train_forward.1} parent=31 // pred_check
        %p232 = pneg %p33
      $region34: #{det_bench_train_forward.1} parent=31 // pred_check_branch
        %234 = sbr.rel (%p232) target = $region36
      $region35: #{det_bench_train_forward.1} parent=31 // pred_region
        %s235 = smul.u32 2, %s13
        %p236 = scmp.lt.s32.totalorder %s235, 5
        %s237 = scalar_select %p236, %s235, 5
        %s238 = smul.addr %s237, 4
        %s239 = scalar_lea.vmem %s0, %s238
        %s240 = smul.u32 2, %s13
      $region36: #{det_bench_train_forward.1} parent=31 // pred_fallthru
        _
      // Predicated region
      $region37: #{det_bench_train_forward.1} parent=31 // pred_check
        %p241 = pneg %p143
      $region38: #{det_bench_train_forward.1} parent=31 // pred_check_branch
        %243 = sbr.rel (%p241) target = $region40
      $region39: #{det_bench_train_forward.1} parent=31 // pred_region
        %s244 = smul.u32 2, %s13
        %p245 = scmp.lt.s32.totalorder %s244, 5
        %s246 = scalar_select %p245, %s244, 5
        %s247 = smul.addr %s246, 8
        %s248 = scalar_lea.vmem %s5, %s247
        %s249 = smul.u32 2, %s13
      $region40: #{det_bench_train_forward.1} parent=31 // pred_fallthru
        _
      // Predicated region
      $region41: #{det_bench_train_forward.1} parent=31 // pred_check
        %p250 = pneg %p169
      $region42: #{det_bench_train_forward.1} parent=31 // pred_check_branch
        %252 = sbr.rel (%p250) target = $region44
      $region43: #{det_bench_train_forward.1} parent=31 // pred_region
        %s253 = smul.u32 2, %s13
        %p254 = scmp.lt.s32.totalorder %s253, 5
        %s255 = scalar_select %p254, %s253, 5
        %s256 = smul.addr %s255, 8
        %s257 = scalar_lea.vmem %s6, %s256
        %s258 = smul.u32 2, %s13
      $region44: #{det_bench_train_forward.1} parent=31 // pred_fallthru
        _
    $region32: #{det_bench_train_forward.1} parent=5 // pred_fallthru
      _
    %p259 = scmp.le.s32.totalorder 1, %s13
    %p260 = scmp.lt.s32.totalorder %s13, 4
    %p261 = pnand %p259, %p260
    %p262 = pneg %p261
    // Predicated region
    $region45: #{det_bench_train_forward.1} parent=5 // pred_check
      _
    $region46: #{det_bench_train_forward.1} parent=5 // pred_check_branch
      %264 = sbr.rel (%p261) target = $region48
    $region47: #{det_bench_train_forward.1} parent=5 // pred_region
      %s265 = ssub.s32 %s13, 1
      %s266 = smul.u32 2, %s18
      %p267 = scmp.lt.s32.totalorder %s266, 5
      %s268 = scalar_select %p267, %s266, 5
      %s269 = smul.addr %s268, 4
      %s270 = scalar_lea.vmem %s0, %s269
      %p271 = pneg %p39
      %p272 = pneg %p36
      %p273 = pneg %p60
      %p274 = pneg %p57
      %p275 = pneg %p81
      %p276 = pneg %p78
      %p277 = pneg %p102
      %p278 = pneg %p99
      %p279 = pneg %p123
      %p280 = pneg %p120
      %s281 = smul.u32 2, %s18
      %p282 = scmp.lt.s32.totalorder %s281, 5
      %s283 = scalar_select %p282, %s281, 5
      %s284 = smul.addr %s283, 8
      %s285 = scalar_lea.vmem %s5, %s284
      %p286 = pneg %p149
      %p287 = pneg %p146
      %s288 = smul.u32 2, %s18
      %p289 = scmp.lt.s32.totalorder %s288, 5
      %s290 = scalar_select %p289, %s288, 5
      %s291 = smul.addr %s290, 8
      %s292 = scalar_lea.vmem %s6, %s291
      %p293 = pneg %p175
      %p294 = pneg %p172
      %p295 = pneg %p201
      %p296 = pneg %p198
      %p297 = scmp.lt.s32.totalorder %s18, 2
      %s298 = scalar_select %p297, %s18, 2
      %s299 = smul.addr %s298, 8
      %s300 = scalar_lea.vmem %s7, %s299
      %s301 = smul.u32 2, %s18
      %p302 = scmp.lt.s32.totalorder %s301, 5
      %s303 = scalar_select %p302, %s301, 5
      %s304 = smul.addr %s303, 4
      %s305 = scalar_lea.vmem %s0, %s304
      %s306 = smul.u32 2, %s18
      %s307 = smul.u32 2, %s18
      %p308 = scmp.lt.s32.totalorder %s307, 5
      %s309 = scalar_select %p308, %s307, 5
      %s310 = smul.addr %s309, 8
      %s311 = scalar_lea.vmem %s5, %s310
      %s312 = smul.u32 2, %s18
      %s313 = smul.u32 2, %s18
      %p314 = scmp.lt.s32.totalorder %s313, 5
      %s315 = scalar_select %p314, %s313, 5
      %s316 = smul.addr %s315, 8
      %s317 = scalar_lea.vmem %s6, %s316
      %s318 = smul.u32 2, %s18
      %p319 = scmp.lt.s32.totalorder %s18, 2
      %s320 = scalar_select %p319, %s18, 2
      %s321 = smul.addr %s320, 8
      %s322 = scalar_lea.vmem %s7, %s321
      %v324 = vld [vmem:[%s305] sm:$0xf]
      %v325 = vld [vmem:[%s305 + $0x4] sm:$0xf]
      %v326 = vld [vmem:[%s1] sm:$0xf]
      %v327 = vld [vmem:[%s2] sm:$0x1]
      %v329 = vlaneseq
      %v330 = vshrl.u32 %v329, 7
      %v331 = vsub.s32 0, %v330
      %v332 = vrot.slane %v327, %v331
      %v336 = vunpack.c.l.b16 %v324
      %v337 = vunpack.c.l.b16 %v325
      %v338 = vpack.c.b16 %v337, %v336
      %vm339 = vcmask 64512
      %v341 = vsel %vm339, %v338, 0
      %vm343 = vcmask 1043456
      %v345 = vsel %vm343, %v326, 0
      %347 = vmatprep.subr.bf16.mxu0 0
      %348 = vmatpush1.bf16.msra.mxu0 0
      %349 = vmatprep.subr.bf16.mxu0 0
      %350 = vmatpush1.bf16.msra.mxu0 0
      %351 = vmatprep.subr.bf16.mxu0 0
      %352 = vmatpush1.bf16.msra.mxu0 0
      %353 = vmatprep.subr.bf16.mxu0 0
      %354 = vmatpush1.bf16.msra.mxu0 0
      %355 = vmatprep.subr.bf16.mxu0 0
      %356 = vmatpush1.bf16.msra.mxu0 0
      %357 = vmatprep.subr.bf16.mxu0 0
      %358 = vmatpush1.bf16.msra.mxu0 0
      %359 = vmatprep.subr.bf16.mxu0 0
      %360 = vmatpush1.bf16.msra.mxu0 0
      %361 = vmatprep.subr.bf16.mxu0 0
      %362 = vmatpush1.bf16.msra.mxu0 %v345
      %363 = vmatprep.subr.bf16.mxu0 0
      %364 = vmatpush2.bf16.msra.mxu0 0
      %365 = vmatprep.subr.bf16.mxu0 0
      %366 = vmatpush2.bf16.msra.mxu0 0
      %367 = vmatprep.subr.bf16.mxu0 0
      %368 = vmatpush2.bf16.msra.mxu0 0
      %369 = vmatprep.subr.bf16.mxu0 0
      %370 = vmatpush2.bf16.msra.mxu0 0
      %371 = vmatprep.subr.bf16.mxu0 0
      %372 = vmatpush2.bf16.msra.mxu0 0
      %373 = vmatprep.subr.bf16.mxu0 0
      %374 = vmatpush2.bf16.msra.mxu0 0
      %375 = vmatprep.subr.bf16.mxu0 0
      %376 = vmatpush2.bf16.msra.mxu0 0
      %377 = vmatprep.subr.bf16.mxu0 0
      %378 = vmatpush2.bf16.msra.mxu0 0
      %379 = vmatprep.mubr.bf16.mxu0 0
      %380 = vmatmul.mubr.bf16.gmra.mxu0 %v341
      %v381 = vpop.f32.mrf.mxu0
      %v382 = vadd.f32 %v332, %v381
      %v383 = vpop.f32.mrf.mxu0
      %v384 = vpop.f32.mrf.mxu0
      %v385 = vadd.f32 %v332, %v384
      %v386 = vpop.f32.mrf.mxu0
      %387 = vdwg.mxu0
      %v388 = vld [vmem:[%s3] sm:$0xf]
      %v389 = vld [vmem:[%s4] sm:$0x1]
      %v391 = vlaneseq
      %v392 = vshrl.u32 %v391, 7
      %v393 = vsub.s32 0, %v392
      %v394 = vrot.slane %v389, %v393
      %v397 = vsel %vm343, %v388, 0
      %399 = vmatprep.subr.bf16.mxu0 0
      %400 = vmatpush1.bf16.msra.mxu0 0
      %401 = vmatprep.subr.bf16.mxu0 0
      %402 = vmatpush1.bf16.msra.mxu0 0
      %403 = vmatprep.subr.bf16.mxu0 0
      %404 = vmatpush1.bf16.msra.mxu0 0
      %405 = vmatprep.subr.bf16.mxu0 0
      %406 = vmatpush1.bf16.msra.mxu0 0
      %407 = vmatprep.subr.bf16.mxu0 0
      %408 = vmatpush1.bf16.msra.mxu0 0
      %409 = vmatprep.subr.bf16.mxu0 0
      %410 = vmatpush1.bf16.msra.mxu0 0
      %411 = vmatprep.subr.bf16.mxu0 0
      %412 = vmatpush1.bf16.msra.mxu0 0
      %413 = vmatprep.subr.bf16.mxu0 0
      %414 = vmatpush1.bf16.msra.mxu0 %v397
      %415 = vmatprep.subr.bf16.mxu0 0
      %416 = vmatpush2.bf16.msra.mxu0 0
      %417 = vmatprep.subr.bf16.mxu0 0
      %418 = vmatpush2.bf16.msra.mxu0 0
      %419 = vmatprep.subr.bf16.mxu0 0
      %420 = vmatpush2.bf16.msra.mxu0 0
      %421 = vmatprep.subr.bf16.mxu0 0
      %422 = vmatpush2.bf16.msra.mxu0 0
      %423 = vmatprep.subr.bf16.mxu0 0
      %424 = vmatpush2.bf16.msra.mxu0 0
      %425 = vmatprep.subr.bf16.mxu0 0
      %426 = vmatpush2.bf16.msra.mxu0 0
      %427 = vmatprep.subr.bf16.mxu0 0
      %428 = vmatpush2.bf16.msra.mxu0 0
      %429 = vmatprep.subr.bf16.mxu0 0
      %430 = vmatpush2.bf16.msra.mxu0 0
      %431 = vmatprep.mubr.bf16.mxu0 0
      %432 = vmatmul.mubr.bf16.gmra.mxu0 %v341
      %v433 = vpop.f32.mrf.mxu0
      %v434 = vadd.f32 %v394, %v433
      %v435 = vpop.f32.mrf.mxu0
      %v436 = vpop.f32.mrf.mxu0
      %v437 = vadd.f32 %v394, %v436
      %v438 = vpop.f32.mrf.mxu0
      %439 = vdwg.mxu0
      %v440 = vlaneseq
      %v441 = vand.u32 %v440, 127
      %v442 = vld [vmem:[%s311] sm:$0xff]
      %v443 = vld [vmem:[%s311 + $0x8] sm:$0xff]
      %vm444 = vcmp.ge.s32.totalorder %v441, 0
      %vm445 = vcmp.lt.s32.totalorder %v441, 4
      %vm446 = vmand %vm444, %vm445
      %447 = vset.pattern.permute.xlu0 0
      %448 = vperm.xlu0 %447, %v442
      %v449 = vpop.permute.xlu0 %448
      %450 = vset.pattern.permute.xlu0 0
      %451 = vperm.xlu0 %450, %v443
      %v452 = vpop.permute.xlu0 %451
      %vm453 = vcmp.eq.s32.totalorder %v441, %v449
      %vm454 = vcmp.eq.s32.totalorder %v441, %v452
      %vm455 = vmand %vm446, %vm453
      %vm456 = vmand %vm446, %vm454
      %vm457 = vcmp.eq.s32.totalorder %v442, 4294967294
      %vm458 = vcmp.eq.s32.totalorder %v443, 4294967294
      %v459 = vsel %vm457, 1, 0
      %v460 = vsel %vm458, 1, 0
      %461 = vset.pattern.permute.xlu0 0
      %462 = vperm.xlu0 %461, %v459
      %v463 = vpop.permute.xlu0 %462
      %464 = vset.pattern.permute.xlu0 0
      %465 = vperm.xlu0 %464, %v460
      %v466 = vpop.permute.xlu0 %465
      %vm467 = vcmp.eq.s32.totalorder %v463, 1
      %vm468 = vcmp.eq.s32.totalorder %v466, 1
      %vm469 = vmand %vm446, %vm467
      %vm470 = vmand %vm446, %vm468
      %vm471 = vcmp.ge.s32.totalorder %v441, 4
      %vm472 = vcmp.lt.s32.totalorder %v441, 8
      %vm473 = vmand %vm471, %vm472
      %v474 = vsub.s32 %v441, 4
      %475 = vset.pattern.permute.xlu0 1
      %476 = vperm.xlu0 %475, %v442
      %v477 = vpop.permute.xlu0 %476
      %478 = vset.pattern.permute.xlu0 1
      %479 = vperm.xlu0 %478, %v443
      %v480 = vpop.permute.xlu0 %479
      %vm481 = vcmp.eq.s32.totalorder %v474, %v477
      %vm482 = vcmp.eq.s32.totalorder %v474, %v480
      %vm483 = vmand %vm473, %vm481
      %vm484 = vmand %vm473, %vm482
      %vm485 = vmor %vm455, %vm483
      %vm486 = vmor %vm456, %vm484
      %487 = vset.pattern.permute.xlu0 1
      %488 = vperm.xlu0 %487, %v459
      %v489 = vpop.permute.xlu0 %488
      %490 = vset.pattern.permute.xlu0 1
      %491 = vperm.xlu0 %490, %v460
      %v492 = vpop.permute.xlu0 %491
      %vm493 = vcmp.eq.s32.totalorder %v489, 1
      %vm494 = vcmp.eq.s32.totalorder %v492, 1
      %vm495 = vmand %vm473, %vm493
      %vm496 = vmand %vm473, %vm494
      %vm497 = vmor %vm469, %vm495
      %vm498 = vmor %vm470, %vm496
      %v499 = vsel %vm485, 1, 0
      %v500 = vsel %vm486, 1, 0
      %v501 = vcvt.s32.f32 %v499
      %v502 = vcvt.s32.f32 %v500
      %v503 = vsel %vm497, 1, 0
      %v504 = vsel %vm498, 1, 0
      %v505 = vcvt.s32.f32 %v503
      %v506 = vcvt.s32.f32 %v504
      %v507 = vsub.f32 1.0, %v505
      %v508 = vsub.f32 1.0, %v506
      %v509 = vand.u32 2147483647, %v382
      %v510 = vand.u32 2147483647, %v385
      %v511 = vsub.f32 0.0, %v509
      %v512 = vsub.f32 0.0, %v510
      %v513 = vmul.f32 %v511, 1.442695
      %v514 = vpow.pop %v513
      %v515 = vmul.f32 %v512, 1.442695
      %v516 = vpow.pop %v515
      %v517 = vadd.f32 %v514, 1.0
      %v518 = vlog2.pop %v517
      %v519 = vmul.f32 %v518, 0.6931472
      %v520 = vmul.f32 -0.5, %v514
      %v521 = vadd.f32 %v520, 1.0
      %v522 = vmul.f32 %v521, %v514
      %v523 = vand.u32 2147483647, %v514
      %vm524 = vcmp.lt.f32.partialorder %v523, 0.0004427343
      %v525 = vsel %vm524, %v522, %v519
      %v526 = vadd.f32 %v516, 1.0
      %v527 = vlog2.pop %v526
      %v528 = vmul.f32 %v527, 0.6931472
      %v529 = vmul.f32 -0.5, %v516
      %v530 = vadd.f32 %v529, 1.0
      %v531 = vmul.f32 %v530, %v516
      %v532 = vand.u32 2147483647, %v516
      %vm533 = vcmp.lt.f32.partialorder %v532, 0.0004427343
      %v534 = vsel %vm533, %v531, %v528
      %v535 = vmax.f32 %v382, 0.0
      %v536 = vmax.f32 %v385, 0.0
      %v537 = vmul.f32 %v382, %v501
      %v538 = vmul.f32 %v385, %v502
      %v539 = vsub.f32 %v535, %v537
      %v540 = vsub.f32 %v536, %v538
      %v541 = vadd.f32 %v539, %v525
      %v542 = vadd.f32 %v540, %v534
      %v543 = vadd.f32 %v514, 1.0
      %v544 = vadd.f32 %v516, 1.0
      %v545 = vrcp.pop %v543
      %v546 = vrcp.pop %v544
      %vm547 = vcmp.ge.f32.partialorder %v382, 0.0
      %vm548 = vcmp.ge.f32.partialorder %v385, 0.0
      %v549 = vsub.f32 1.0, %v545
      %v550 = vsub.f32 1.0, %v546
      %v551 = vsel %vm547, %v545, %v549
      %v552 = vsel %vm548, %v546, %v550
      %v553 = vsub.f32 1.0, %v551
      %v554 = vsub.f32 1.0, %v552
      %v555 = vsel %vm485, %v553, %v551
      %v556 = vsel %vm486, %v554, %v552
      %v557 = vmul.f32 %v555, %v555
      %v558 = vmul.f32 %v556, %v556
      %v559 = vsel %vm485, 0.25, 0.75
      %v560 = vsel %vm486, 0.25, 0.75
      %v561 = vmul.f32 %v557, %v541
      %v562 = vmul.f32 %v558, %v542
      %v563 = vmul.f32 %v561, %v559
      %v564 = vmul.f32 %v562, %v560
      %v565 = vmul.f32 %v563, %v507
      %v566 = vmul.f32 %v564, %v508
      %v567 = vsel %vm339, %v565, 0.0
      %v568 = vsel %vm339, %v566, 0.0
      %v569 = vadd.f32 %v567, %v568
      %570 = vadd.xlane.f32.xlu0 %v569
      %v571 = vpop.xlane.xlu0 %570
      %v572 = vrot.slane %v571, 4
      %v573 = vadd.f32 %v571, %v572
      %v574 = vrot.slane %v573, 2
      %v575 = vadd.f32 %v573, %v574
      %v576 = vrot.slane %v575, 1
      %v577 = vadd.f32 %v575, %v576
      %s578 = vtos %v577
      %v579 = vld [vmem:[%s317] sm:$0xff]
      %v580 = vld [vmem:[%s317 + $0x8] sm:$0xff]
      %v581 = vsub.f32 %v434, %v579
      %v582 = vsub.f32 %v437, %v580
      %v583 = vand.u32 2147483647, %v581
      %v584 = vand.u32 2147483647, %v582
      %v585 = vmin.f32 %v583, 0.1
      %v586 = vmin.f32 %v584, 0.1
      %v587 = vsub.f32 %v583, %v585
      %v588 = vsub.f32 %v584, %v586
      %v589 = vmul.f32 %v585, 0.5
      %v590 = vmul.f32 %v586, 0.5
      %v591 = vmul.f32 %v589, %v585
      %v592 = vmul.f32 %v590, %v586
      %v593 = vmul.f32 %v587, 0.1
      %v594 = vmul.f32 %v588, 0.1
      %v595 = vadd.f32 %v591, %v593
      %v596 = vadd.f32 %v592, %v594
      %vm597 = vcmp.ne.f32.partialorder %v579, 0.0
      %vm598 = vcmp.ne.f32.partialorder %v580, 0.0
      %v599 = vsel %vm597, 1, 0
      %v600 = vsel %vm598, 1, 0
      %v601 = vcvt.s32.f32 %v599
      %v602 = vcvt.s32.f32 %v600
      %v603 = vmul.f32 %v595, %v601
      %v604 = vmul.f32 %v596, %v602
      %v605 = vsel %vm339, %v603, 0.0
      %v606 = vsel %vm339, %v604, 0.0
      %v607 = vadd.f32 %v605, %v606
      %608 = vadd.xlane.f32.xlu0 %v607
      %v609 = vpop.xlane.xlu0 %608
      %v610 = vrot.slane %v609, 4
      %v611 = vadd.f32 %v609, %v610
      %v612 = vrot.slane %v611, 2
      %v613 = vadd.f32 %v611, %v612
      %v614 = vrot.slane %v613, 1
      %v615 = vadd.f32 %v613, %v614
      %s616 = vtos %v615
      %vm617 = vcmp.eq.s32.totalorder %v441, 0
      %vm618 = vcmp.eq.s32.totalorder %v441, 1
      %v619 = vstv %s616
      %v620 = vsel %vm618, %v619, 0.0
      %v621 = vstv %s578
      %v622 = vsel %vm617, %v621, %v620
      %623 = vst [vmem:[%s322] sm:$0xff] %v622
      %p624 = scmp.lt.s32.totalorder %s18, 2
      %s625 = scalar_select %p624, %s18, 2
      %s626 = smul.addr %s625, 8
      %s627 = scalar_lea.vmem %s7, %s626
      // Predicated region
      $region49: #{det_bench_train_forward.1} parent=47 // pred_check
        %p628 = pneg %p198
      $region50: #{det_bench_train_forward.1} parent=47 // pred_check_branch
        %630 = sbr.rel (%p628) target = $region52
      $region51: #{det_bench_train_forward.1} parent=47 // pred_region
        _
      $region52: #{det_bench_train_forward.1} parent=47 // pred_fallthru
        _
    $region48: #{det_bench_train_forward.1} parent=5 // pred_fallthru
      _
    %p631 = scmp.le.s32.totalorder 2, %s13
    // Predicated region
    $region53: #{det_bench_train_forward.1} parent=5 // pred_check
      %p632 = pneg %p631
    $region54: #{det_bench_train_forward.1} parent=5 // pred_check_branch
      %634 = sbr.rel (%p632) target = $region56
    $region55: #{det_bench_train_forward.1} parent=5 // pred_region
      %s635 = ssub.s32 %s13, 2
      // Predicated region
      $region57: #{det_bench_train_forward.1} parent=55 // pred_check
        %p636 = pneg %p204
      $region58: #{det_bench_train_forward.1} parent=55 // pred_check_branch
        %638 = sbr.rel (%p636) target = $region60
      $region59: #{det_bench_train_forward.1} parent=55 // pred_region
        %p639 = scmp.lt.s32.totalorder %s19, 2
        %s640 = scalar_select %p639, %s19, 2
        %s641 = smul.addr %s640, 8
        %s642 = scalar_lea.vmem %s7, %s641
      $region60: #{det_bench_train_forward.1} parent=55 // pred_fallthru
        _
    $region56: #{det_bench_train_forward.1} parent=5 // pred_fallthru
      _
  $region6: #{det_bench_train_forward.1} parent=0 // loop_footer
    %s17 = sadd.s32 1, %s13
  $region7: #{det_bench_train_forward.1} parent=0 // loop_footer_branch
    %12 = sbr.rel target = $region3
  $region8: #{det_bench_train_forward.1} parent=0 // loop_exit
    _

</llo_original>
